<compile_context>
chip_gen: v5e
topology: v5e:2x2
jax: 0.10.0
libtpu: 0.0.40
codegen_flags: <defaults>
</compile_context>

<pallas_src>
import functools

import jax
import jax.numpy as jnp
from jax import lax
from jax.experimental import pallas as pl
from jax.experimental.pallas import tpu as pltpu


# ----------------------------- small vector helpers (tuples of 3 (8,128) slabs) -------------

def _sub(a, b):
    return tuple(x - y for x, y in zip(a, b))


def _add(a, b):
    return tuple(x + y for x, y in zip(a, b))


def _scale(a, s):
    return tuple(x * s for x in a)


def _dot(a, b):
    return a[0] * b[0] + a[1] * b[1] + a[2] * b[2]


def _cross(a, b):
    return (a[1] * b[2] - a[2] * b[1],
            a[2] * b[0] - a[0] * b[2],
            a[0] * b[1] - a[1] * b[0])


def _cone_field_sq(tri, load_point, inv_sigma_sq):
    """Sum over the 3 query vertices of the squared conical distance field of triangle `tri`.

    `tri` is a 3-tuple of 3-tuples of (8, 128) slabs; `load_point(k)` lazily loads the k-th
    query vertex (keeps at most one query point live at a time -> low vreg pressure).
    """
    a, b, c = tri
    cnt = _scale(_add(_add(a, b), c), 1.0 / 3.0)
    n = _cross(_sub(b, a), _sub(c, a))
    inv_nn = lax.rsqrt(_dot(n, n) + 1e-12)              # EUP rsqrt, no divide
    n_hat = _scale(n, inv_nn)
    da = _dot(_sub(a, cnt), _sub(a, cnt))
    db = _dot(_sub(b, cnt), _sub(b, cnt))
    dc = _dot(_sub(c, cnt), _sub(c, cnt))
    r_sq = jnp.maximum(jnp.maximum(da, db), dc) + 1e-12
    inv_r_sq = pl.reciprocal(r_sq, approx=True)         # keep r^2, never materialize r
    total = None
    for k in range(3):
        p = load_point(k)
        pc = _sub(p, cnt)
        d = _dot(pc, n_hat)                              # signed height along the normal
        radial = _sub(pc, _scale(n_hat, d))
        rho_sq = _dot(radial, radial) + 1e-12
        rho_over_r = jnp.sqrt(rho_sq * inv_r_sq)         # sqrt + recip merged (1 EUP op/point)
        phi = jnp.maximum(-d, 0.0) * jnp.maximum(1.0 - rho_over_r, 0.0)
        sq = phi * phi
        total = sq if total is None else total + sq
    return total * inv_sigma_sq                          # 1/sigma^2 folded in once


# ----------------------------------------- Pallas kernel ------------------------------------

def _pen_kernel(data_ref, out_ref, *, inv_sigma_sq, strips):
    # grid = (split, pair-tile). Axis 0 is parallel (v7x megacore), axis 1 is the reduction;
    # the (TS, 128) output block is resident across axis 1 and accumulated with VPU adds.
    @pl.when(pl.program_id(1) == 0)
    def _():
        out_ref[...] = jnp.zeros_like(out_ref)

    # Strip-loop: process 8 sublanes (1 vreg per component) at a time so the live set stays
    # far below the 64-vreg file — no spills through the single vst slot.
    @pl.loop(0, strips)
    def _(si):
        off = pl.multiple_of(si * 8, 8)

        def comp(c):
            return data_ref[c, pl.ds(off, 8), :].astype(jnp.float32)

        def tri(base):
            return tuple((comp(base + 3 * k + 0),
                          comp(base + 3 * k + 1),
                          comp(base + 3 * k + 2)) for k in range(3))

        def point_loader(base):
            def load(k):
                return (comp(base + 3 * k + 0),
                        comp(base + 3 * k + 1),
                        comp(base + 3 * k + 2))
            return load

        # rows 0..8: receiving triangle; rows 9..17: intruding triangle; row 18: valid mask.
        pen = (_cone_field_sq(tri(0), point_loader(9), inv_sigma_sq) +
               _cone_field_sq(tri(9), point_loader(0), inv_sigma_sq))
        valid = comp(18)
        out_ref[pl.ds(off, 8), :] = out_ref[pl.ds(off, 8), :] + pen * valid


def _default_num_splits():
    """2-way split only on dual-TensorCore chips (v7x); 1 on single-TC v5e/v6e."""
    try:
        kind = jax.devices()[0].device_kind.lower()
        if "v7" in kind or "7x" in kind:
            return 2
    except Exception:
        pass
    return 1


def pen_loss_pallas(recv_T, intr_T, validf, sigma, *, tile_sublanes=256, num_splits=None):
    """recv_T, intr_T: (9, N) float32; validf: (N,) float32. Returns scalar float32."""
    lanes = 128
    n = validf.shape[0]

    if num_splits is None:
        num_splits = _default_num_splits()

    # Merge into one (19, N) array — no full-data transpose anywhere; the reshape below to
    # (19, S_pad, 128) is layout-free.
    merged = jnp.concatenate(
        [recv_T.astype(jnp.float32),
         intr_T.astype(jnp.float32),
         validf.astype(jnp.float32)[None, :]], axis=0)          # (19, N)
    rows = merged.shape[0]                                      # 19

    s = -(-n // lanes)                                          # sublanes needed
    ts = max(8, min(tile_sublanes, -(-s // 8) * 8))             # shrink tile for tiny inputs
    blocks = max(1, -(-s // ts))                                # pair tiles needed
    blocks_per_split = -(-blocks // num_splits)
    total_blocks = blocks_per_split * num_splits
    s_pad = total_blocks * ts
    n_pad = s_pad * lanes

    merged = jnp.pad(merged, ((0, 0), (0, n_pad - n)))          # (19, n_pad)
    data = merged.reshape(rows, s_pad, lanes)                   # (19, S_pad, 128), layout-free

    strips = ts // 8

    out = pl.pallas_call(
        functools.partial(_pen_kernel,
                          inv_sigma_sq=float(1.0 / (sigma * sigma)),
                          strips=strips),
        out_shape=jax.ShapeDtypeStruct((num_splits, ts, lanes), jnp.float32),
        grid=(num_splits, blocks_per_split),
        in_specs=[
            pl.BlockSpec((rows, ts, lanes),
                         lambda p, i, bps=blocks_per_split: (0, p * bps + i, 0)),
        ],
        out_specs=pl.BlockSpec((None, ts, lanes), lambda p, i: (p, 0, 0)),
        compiler_params=pltpu.CompilerParams(
            dimension_semantics=("parallel", "arbitrary")),
        cost_estimate=pl.CostEstimate(
            flops=250 * n_pad,
            transcendentals=10 * n_pad,
            bytes_accessed=rows * 4 * n_pad + num_splits * ts * lanes * 4),
    )(data)
    return jnp.sum(out)


# ------------------------------------- plain-JAX glue ---------------------------------------

def brute_force_collisions(triangles, faces, max_collisions):
    """Stand-in for the BVH search tree: AABB-overlap, non-vertex-sharing face pairs."""
    B, F = triangles.shape[:2]
    bb_min = triangles.min(axis=2)                 # (B, F, 3)
    bb_max = triangles.max(axis=2)                 # (B, F, 3)
    overlap = jnp.all((bb_min[:, :, None, :] <= bb_max[:, None, :, :]) &
                      (bb_max[:, :, None, :] >= bb_min[:, None, :, :]), axis=-1)  # (B, F, F)
    shares = jnp.any(faces[:, None, :, None] == faces[None, :, None, :], axis=(-1, -2))  # (F, F)
    upper = jnp.triu(jnp.ones((F, F), dtype=bool), k=1)
    cand = overlap & (~shares)[None] & upper[None]
    score = jnp.where(cand, (F - jnp.arange(F, dtype=jnp.int32))[None, None, :], 0)
    vals, idxs = jax.lax.top_k(score, max_collisions)                 # (B, F, C)
    intr = jnp.where(vals > 0, idxs.astype(jnp.int32), -1)
    recv = jnp.where(vals > 0, jnp.arange(F, dtype=jnp.int32)[None, :, None], -1)
    return jnp.stack([recv, intr], axis=-1).reshape(B, F * max_collisions, 2)


def gather_collision_pairs(triangles, collision_idxs):
    """Gather pair coordinates already in the kernel's (component, pair) layout."""
    B, F = triangles.shape[:2]
    tri_flat_T = triangles.reshape(B * F, 9).T                 # (9, B*F) — small transpose only
    recv_idx = collision_idxs[..., 0]
    intr_idx = collision_idxs[..., 1]
    valid = (recv_idx >= 0) & (intr_idx >= 0)
    off = (jnp.arange(B, dtype=jnp.int32) * F)[:, None]
    recv_g = jnp.where(valid, recv_idx + off, 0).reshape(-1)
    intr_g = jnp.where(valid, intr_idx + off, 0).reshape(-1)
    recv_T = tri_flat_T[:, recv_g]                              # (9, N) gather on trailing axis
    intr_T = tri_flat_T[:, intr_g]                              # (9, N)
    return recv_T, intr_T, valid.reshape(-1).astype(jnp.float32)


def body_interpenetration_forward(v, faces, max_collisions=8, sigma=0.001):
    """v: (B, NV, 3) float32 vertices; faces: (F, 3) int32. Returns scalar penetration loss."""
    B, NV, _ = v.shape
    faces_ids = faces[None].astype(jnp.int32) + \
        (jnp.arange(B, dtype=jnp.int32) * NV)[:, None, None]          # (B, F, 3)
    triangles = v.reshape(-1, 3)[faces_ids]                           # (B, F, 3, 3)
    collision_idxs = jax.lax.stop_gradient(                           # "with torch.no_grad()"
        brute_force_collisions(triangles, faces, max_collisions))
    recv_T, intr_T, validf = gather_collision_pairs(triangles, collision_idxs)
    loss = pen_loss_pallas(recv_T, intr_T, validf, sigma)
    return loss, (recv_T, intr_T, validf)


def pen_loss_reference(recv_T, intr_T, validf, sigma):
    """Pure-JAX reference matching the kernel math (exact sqrt/divide), for correctness checks."""
    recv_tris = recv_T.T                                       # (N, 9)
    intr_tris = intr_T.T

    def field_sq(tri, pts):
        a, b, c = tri[:, 0:3], tri[:, 3:6], tri[:, 6:9]
        cnt = (a + b + c) / 3.0
        n = jnp.cross(b - a, c - a)
        n_hat = n / jnp.sqrt(jnp.sum(n * n, -1, keepdims=True) + 1e-12)
        r = jnp.sqrt(jnp.maximum(jnp.maximum(jnp.sum((a - cnt) ** 2, -1),
                                             jnp.sum((b - cnt) ** 2, -1)),
                                 jnp.sum((c - cnt) ** 2, -1)) + 1e-12)
        total = 0.0
        for i in range(3):
            p = pts[:, 3 * i:3 * i + 3]
            pc = p - cnt
            d = jnp.sum(pc * n_hat, -1)
            radial = pc - d[:, None] * n_hat
            rho = jnp.sqrt(jnp.sum(radial * radial, -1) + 1e-12)
            phi = jnp.maximum(-d, 0.0) * jnp.maximum(1.0 - rho / r, 0.0) / sigma
            total = total + phi * phi
        return total

    pen = field_sq(recv_tris, intr_tris) + field_sq(intr_tris, recv_tris)
    return jnp.sum(pen * validf)


if __name__ == "__main__":
    key = jax.random.PRNGKey(0)
    k_v, k_f = jax.random.split(key)

    B, NV, F, C = 2, 32, 40, 8            # batch, vertices, faces, max_collisions
    sigma = 0.001

    v = jax.random.uniform(k_v, (B, NV, 3), dtype=jnp.float32) * 0.2
    faces = jax.random.randint(k_f, (F, 3), 0, NV, dtype=jnp.int32)

    loss, (recv_T, intr_T, validf) = body_interpenetration_forward(
        v, faces, max_collisions=C, sigma=sigma)
    loss = jax.block_until_ready(loss)

    ref = jax.block_until_ready(pen_loss_reference(recv_T, intr_T, validf, sigma))

    assert jnp.isfinite(loss), "non-finite kernel output"
    # Kernel uses lax.rsqrt + pl.reciprocal(approx=True); allow a little drift vs exact ref.
    assert jnp.allclose(loss, ref, rtol=1e-2, atol=1e-2), (loss, ref)
    print("KERNEL_OK")
</pallas_src>

<mosaic_0001>
module attributes {stable_mosaic.version = 11 : i64} {
  func.func @_pen_kernel(%arg0: i32, %arg1: i32, %arg2: memref<19x8x128xf32, #tpu.memory_space<vmem>>, %arg3: memref<1x8x128xf32, #tpu.memory_space<vmem>>) attributes {dimension_semantics = [#tpu.dimension_semantics<parallel>, #tpu.dimension_semantics<arbitrary>], iteration_bounds = array<i64: 1, 1>, scalar_prefetch = 0 : i64, scratch_operands = 0 : i64, tpu.core_type = #tpu.core_type<tc>, window_params = [{transform_indices = @transform_0, window_bounds = array<i64: 19, 8, 128>}, {transform_indices = @transform_1, window_bounds = array<i64: 1, 8, 128>}]} {
    %c0_i32 = arith.constant 0 : i32
    %0 = arith.cmpi eq, %arg1, %c0_i32 : i32
    %1 = arith.extui %0 : i1 to i32
    %c0_i32_0 = arith.constant 0 : i32
    %2 = arith.cmpi ne, %1, %c0_i32_0 : i32
    scf.if %2 {
      %cst_104 = arith.constant 0.000000e+00 : f32
      %486 = vector.broadcast %cst_104 : f32 to vector<8x128xf32>
      %c0_105 = arith.constant 0 : index
      %c0_106 = arith.constant 0 : index
      %c0_107 = arith.constant 0 : index
      %487 = vector.load %arg3[%c0_105, %c0_106, %c0_107] : memref<1x8x128xf32, #tpu.memory_space<vmem>>, vector<1x8x128xf32>
      %488 = vector.shape_cast %487 : vector<1x8x128xf32> to vector<8x128xf32>
      %489 = vector.shape_cast %486 : vector<8x128xf32> to vector<1x8x128xf32>
      tpu.vector_store %arg3[%c0_105, %c0_106, %c0_107], %489 {strides = array<i32>} : memref<1x8x128xf32, #tpu.memory_space<vmem>>, vector<1x8x128xf32>,
    } else {
    }
    %c0_i32_1 = arith.constant 0 : i32
    %c1_i32 = arith.constant 1 : i32
    %3 = arith.muli %c0_i32_1, %c1_i32 : i32
    %c0_i32_2 = arith.constant 0 : i32
    %4 = arith.addi %c0_i32_2, %3 : i32
    %c8_i32 = arith.constant 8 : i32
    %5 = arith.muli %4, %c8_i32 : i32
    %6 = tpu.assume_multiple %5, 8 : i32
    %c0 = arith.constant 0 : index
    %7 = arith.index_cast %6 : i32 to index
    %c0_3 = arith.constant 0 : index
    %8 = vector.load %arg2[%c0, %7, %c0_3] : memref<19x8x128xf32, #tpu.memory_space<vmem>>, vector<1x8x128xf32>
    %9 = vector.shape_cast %8 : vector<1x8x128xf32> to vector<8x128xf32>
    %c1 = arith.constant 1 : index
    %10 = arith.index_cast %6 : i32 to index
    %c0_4 = arith.constant 0 : index
    %11 = vector.load %arg2[%c1, %10, %c0_4] : memref<19x8x128xf32, #tpu.memory_space<vmem>>, vector<1x8x128xf32>
    %12 = vector.shape_cast %11 : vector<1x8x128xf32> to vector<8x128xf32>
    %c2 = arith.constant 2 : index
    %13 = arith.index_cast %6 : i32 to index
    %c0_5 = arith.constant 0 : index
    %14 = vector.load %arg2[%c2, %13, %c0_5] : memref<19x8x128xf32, #tpu.memory_space<vmem>>, vector<1x8x128xf32>
    %15 = vector.shape_cast %14 : vector<1x8x128xf32> to vector<8x128xf32>
    %c3 = arith.constant 3 : index
    %16 = arith.index_cast %6 : i32 to index
    %c0_6 = arith.constant 0 : index
    %17 = vector.load %arg2[%c3, %16, %c0_6] : memref<19x8x128xf32, #tpu.memory_space<vmem>>, vector<1x8x128xf32>
    %18 = vector.shape_cast %17 : vector<1x8x128xf32> to vector<8x128xf32>
    %c4 = arith.constant 4 : index
    %19 = arith.index_cast %6 : i32 to index
    %c0_7 = arith.constant 0 : index
    %20 = vector.load %arg2[%c4, %19, %c0_7] : memref<19x8x128xf32, #tpu.memory_space<vmem>>, vector<1x8x128xf32>
    %21 = vector.shape_cast %20 : vector<1x8x128xf32> to vector<8x128xf32>
    %c5 = arith.constant 5 : index
    %22 = arith.index_cast %6 : i32 to index
    %c0_8 = arith.constant 0 : index
    %23 = vector.load %arg2[%c5, %22, %c0_8] : memref<19x8x128xf32, #tpu.memory_space<vmem>>, vector<1x8x128xf32>
    %24 = vector.shape_cast %23 : vector<1x8x128xf32> to vector<8x128xf32>
    %c6 = arith.constant 6 : index
    %25 = arith.index_cast %6 : i32 to index
    %c0_9 = arith.constant 0 : index
    %26 = vector.load %arg2[%c6, %25, %c0_9] : memref<19x8x128xf32, #tpu.memory_space<vmem>>, vector<1x8x128xf32>
    %27 = vector.shape_cast %26 : vector<1x8x128xf32> to vector<8x128xf32>
    %c7 = arith.constant 7 : index
    %28 = arith.index_cast %6 : i32 to index
    %c0_10 = arith.constant 0 : index
    %29 = vector.load %arg2[%c7, %28, %c0_10] : memref<19x8x128xf32, #tpu.memory_space<vmem>>, vector<1x8x128xf32>
    %30 = vector.shape_cast %29 : vector<1x8x128xf32> to vector<8x128xf32>
    %c8 = arith.constant 8 : index
    %31 = arith.index_cast %6 : i32 to index
    %c0_11 = arith.constant 0 : index
    %32 = vector.load %arg2[%c8, %31, %c0_11] : memref<19x8x128xf32, #tpu.memory_space<vmem>>, vector<1x8x128xf32>
    %33 = vector.shape_cast %32 : vector<1x8x128xf32> to vector<8x128xf32>
    %34 = arith.addf %9, %18 : vector<8x128xf32>
    %35 = arith.addf %12, %21 : vector<8x128xf32>
    %36 = arith.addf %15, %24 : vector<8x128xf32>
    %37 = arith.addf %34, %27 : vector<8x128xf32>
    %38 = arith.addf %35, %30 : vector<8x128xf32>
    %39 = arith.addf %36, %33 : vector<8x128xf32>
    %cst = arith.constant 0.333333343 : f32
    %40 = vector.broadcast %cst : f32 to vector<8x128xf32>
    %41 = arith.mulf %37, %40 : vector<8x128xf32>
    %cst_12 = arith.constant 0.333333343 : f32
    %42 = vector.broadcast %cst_12 : f32 to vector<8x128xf32>
    %43 = arith.mulf %38, %42 : vector<8x128xf32>
    %cst_13 = arith.constant 0.333333343 : f32
    %44 = vector.broadcast %cst_13 : f32 to vector<8x128xf32>
    %45 = arith.mulf %39, %44 : vector<8x128xf32>
    %46 = arith.subf %18, %9 : vector<8x128xf32>
    %47 = arith.subf %21, %12 : vector<8x128xf32>
    %48 = arith.subf %24, %15 : vector<8x128xf32>
    %49 = arith.subf %27, %9 : vector<8x128xf32>
    %50 = arith.subf %30, %12 : vector<8x128xf32>
    %51 = arith.subf %33, %15 : vector<8x128xf32>
    %52 = arith.mulf %47, %51 : vector<8x128xf32>
    %53 = arith.mulf %48, %50 : vector<8x128xf32>
    %54 = arith.subf %52, %53 : vector<8x128xf32>
    %55 = arith.mulf %48, %49 : vector<8x128xf32>
    %56 = arith.mulf %46, %51 : vector<8x128xf32>
    %57 = arith.subf %55, %56 : vector<8x128xf32>
    %58 = arith.mulf %46, %50 : vector<8x128xf32>
    %59 = arith.mulf %47, %49 : vector<8x128xf32>
    %60 = arith.subf %58, %59 : vector<8x128xf32>
    %61 = arith.mulf %54, %54 : vector<8x128xf32>
    %62 = arith.mulf %57, %57 : vector<8x128xf32>
    %63 = arith.addf %61, %62 : vector<8x128xf32>
    %64 = arith.mulf %60, %60 : vector<8x128xf32>
    %65 = arith.addf %63, %64 : vector<8x128xf32>
    %cst_14 = arith.constant 9.99999996E-13 : f32
    %66 = vector.broadcast %cst_14 : f32 to vector<8x128xf32>
    %67 = arith.addf %65, %66 : vector<8x128xf32>
    %68 = math.rsqrt %67 : vector<8x128xf32>
    %69 = arith.mulf %54, %68 : vector<8x128xf32>
    %70 = arith.mulf %57, %68 : vector<8x128xf32>
    %71 = arith.mulf %60, %68 : vector<8x128xf32>
    %72 = arith.subf %9, %41 : vector<8x128xf32>
    %73 = arith.subf %12, %43 : vector<8x128xf32>
    %74 = arith.subf %15, %45 : vector<8x128xf32>
    %75 = arith.subf %9, %41 : vector<8x128xf32>
    %76 = arith.subf %12, %43 : vector<8x128xf32>
    %77 = arith.subf %15, %45 : vector<8x128xf32>
    %78 = arith.mulf %72, %75 : vector<8x128xf32>
    %79 = arith.mulf %73, %76 : vector<8x128xf32>
    %80 = arith.addf %78, %79 : vector<8x128xf32>
    %81 = arith.mulf %74, %77 : vector<8x128xf32>
    %82 = arith.addf %80, %81 : vector<8x128xf32>
    %83 = arith.subf %18, %41 : vector<8x128xf32>
    %84 = arith.subf %21, %43 : vector<8x128xf32>
    %85 = arith.subf %24, %45 : vector<8x128xf32>
    %86 = arith.subf %18, %41 : vector<8x128xf32>
    %87 = arith.subf %21, %43 : vector<8x128xf32>
    %88 = arith.subf %24, %45 : vector<8x128xf32>
    %89 = arith.mulf %83, %86 : vector<8x128xf32>
    %90 = arith.mulf %84, %87 : vector<8x128xf32>
    %91 = arith.addf %89, %90 : vector<8x128xf32>
    %92 = arith.mulf %85, %88 : vector<8x128xf32>
    %93 = arith.addf %91, %92 : vector<8x128xf32>
    %94 = arith.subf %27, %41 : vector<8x128xf32>
    %95 = arith.subf %30, %43 : vector<8x128xf32>
    %96 = arith.subf %33, %45 : vector<8x128xf32>
    %97 = arith.subf %27, %41 : vector<8x128xf32>
    %98 = arith.subf %30, %43 : vector<8x128xf32>
    %99 = arith.subf %33, %45 : vector<8x128xf32>
    %100 = arith.mulf %94, %97 : vector<8x128xf32>
    %101 = arith.mulf %95, %98 : vector<8x128xf32>
    %102 = arith.addf %100, %101 : vector<8x128xf32>
    %103 = arith.mulf %96, %99 : vector<8x128xf32>
    %104 = arith.addf %102, %103 : vector<8x128xf32>
    %105 = arith.maximumf %82, %93 : vector<8x128xf32>
    %106 = arith.maximumf %105, %104 : vector<8x128xf32>
    %cst_15 = arith.constant 9.99999996E-13 : f32
    %107 = vector.broadcast %cst_15 : f32 to vector<8x128xf32>
    %108 = arith.addf %106, %107 : vector<8x128xf32>
    %109 = tpu.reciprocal %108 {approx = true} : vector<8x128xf32> -> vector<8x128xf32>
    %c9 = arith.constant 9 : index
    %110 = arith.index_cast %6 : i32 to index
    %c0_16 = arith.constant 0 : index
    %111 = vector.load %arg2[%c9, %110, %c0_16] : memref<19x8x128xf32, #tpu.memory_space<vmem>>, vector<1x8x128xf32>
    %112 = vector.shape_cast %111 : vector<1x8x128xf32> to vector<8x128xf32>
    %c10 = arith.constant 10 : index
    %113 = arith.index_cast %6 : i32 to index
    %c0_17 = arith.constant 0 : index
    %114 = vector.load %arg2[%c10, %113, %c0_17] : memref<19x8x128xf32, #tpu.memory_space<vmem>>, vector<1x8x128xf32>
    %115 = vector.shape_cast %114 : vector<1x8x128xf32> to vector<8x128xf32>
    %c11 = arith.constant 11 : index
    %116 = arith.index_cast %6 : i32 to index
    %c0_18 = arith.constant 0 : index
    %117 = vector.load %arg2[%c11, %116, %c0_18] : memref<19x8x128xf32, #tpu.memory_space<vmem>>, vector<1x8x128xf32>
    %118 = vector.shape_cast %117 : vector<1x8x128xf32> to vector<8x128xf32>
    %119 = arith.subf %112, %41 : vector<8x128xf32>
    %120 = arith.subf %115, %43 : vector<8x128xf32>
    %121 = arith.subf %118, %45 : vector<8x128xf32>
    %122 = arith.mulf %119, %69 : vector<8x128xf32>
    %123 = arith.mulf %120, %70 : vector<8x128xf32>
    %124 = arith.addf %122, %123 : vector<8x128xf32>
    %125 = arith.mulf %121, %71 : vector<8x128xf32>
    %126 = arith.addf %124, %125 : vector<8x128xf32>
    %127 = arith.mulf %69, %126 : vector<8x128xf32>
    %128 = arith.mulf %70, %126 : vector<8x128xf32>
    %129 = arith.mulf %71, %126 : vector<8x128xf32>
    %130 = arith.subf %119, %127 : vector<8x128xf32>
    %131 = arith.subf %120, %128 : vector<8x128xf32>
    %132 = arith.subf %121, %129 : vector<8x128xf32>
    %133 = arith.mulf %130, %130 : vector<8x128xf32>
    %134 = arith.mulf %131, %131 : vector<8x128xf32>
    %135 = arith.addf %133, %134 : vector<8x128xf32>
    %136 = arith.mulf %132, %132 : vector<8x128xf32>
    %137 = arith.addf %135, %136 : vector<8x128xf32>
    %cst_19 = arith.constant 9.99999996E-13 : f32
    %138 = vector.broadcast %cst_19 : f32 to vector<8x128xf32>
    %139 = arith.addf %137, %138 : vector<8x128xf32>
    %140 = arith.mulf %139, %109 : vector<8x128xf32>
    %141 = math.sqrt %140 : vector<8x128xf32>
    %cst_20 = arith.constant 0.000000e+00 : f32
    %142 = vector.broadcast %cst_20 : f32 to vector<8x128xf32>
    %143 = arith.subf %142, %126 : vector<8x128xf32>
    %cst_21 = arith.constant 0.000000e+00 : f32
    %144 = vector.broadcast %cst_21 : f32 to vector<8x128xf32>
    %145 = arith.maximumf %143, %144 : vector<8x128xf32>
    %cst_22 = arith.constant 1.000000e+00 : f32
    %146 = vector.broadcast %cst_22 : f32 to vector<8x128xf32>
    %147 = arith.subf %146, %141 : vector<8x128xf32>
    %cst_23 = arith.constant 0.000000e+00 : f32
    %148 = vector.broadcast %cst_23 : f32 to vector<8x128xf32>
    %149 = arith.maximumf %147, %148 : vector<8x128xf32>
    %150 = arith.mulf %145, %149 : vector<8x128xf32>
    %151 = arith.mulf %150, %150 : vector<8x128xf32>
    %c12 = arith.constant 12 : index
    %152 = arith.index_cast %6 : i32 to index
    %c0_24 = arith.constant 0 : index
    %153 = vector.load %arg2[%c12, %152, %c0_24] : memref<19x8x128xf32, #tpu.memory_space<vmem>>, vector<1x8x128xf32>
    %154 = vector.shape_cast %153 : vector<1x8x128xf32> to vector<8x128xf32>
    %c13 = arith.constant 13 : index
    %155 = arith.index_cast %6 : i32 to index
    %c0_25 = arith.constant 0 : index
    %156 = vector.load %arg2[%c13, %155, %c0_25] : memref<19x8x128xf32, #tpu.memory_space<vmem>>, vector<1x8x128xf32>
    %157 = vector.shape_cast %156 : vector<1x8x128xf32> to vector<8x128xf32>
    %c14 = arith.constant 14 : index
    %158 = arith.index_cast %6 : i32 to index
    %c0_26 = arith.constant 0 : index
    %159 = vector.load %arg2[%c14, %158, %c0_26] : memref<19x8x128xf32, #tpu.memory_space<vmem>>, vector<1x8x128xf32>
    %160 = vector.shape_cast %159 : vector<1x8x128xf32> to vector<8x128xf32>
    %161 = arith.subf %154, %41 : vector<8x128xf32>
    %162 = arith.subf %157, %43 : vector<8x128xf32>
    %163 = arith.subf %160, %45 : vector<8x128xf32>
    %164 = arith.mulf %161, %69 : vector<8x128xf32>
    %165 = arith.mulf %162, %70 : vector<8x128xf32>
    %166 = arith.addf %164, %165 : vector<8x128xf32>
    %167 = arith.mulf %163, %71 : vector<8x128xf32>
    %168 = arith.addf %166, %167 : vector<8x128xf32>
    %169 = arith.mulf %69, %168 : vector<8x128xf32>
    %170 = arith.mulf %70, %168 : vector<8x128xf32>
    %171 = arith.mulf %71, %168 : vector<8x128xf32>
    %172 = arith.subf %161, %169 : vector<8x128xf32>
    %173 = arith.subf %162, %170 : vector<8x128xf32>
    %174 = arith.subf %163, %171 : vector<8x128xf32>
    %175 = arith.mulf %172, %172 : vector<8x128xf32>
    %176 = arith.mulf %173, %173 : vector<8x128xf32>
    %177 = arith.addf %175, %176 : vector<8x128xf32>
    %178 = arith.mulf %174, %174 : vector<8x128xf32>
    %179 = arith.addf %177, %178 : vector<8x128xf32>
    %cst_27 = arith.constant 9.99999996E-13 : f32
    %180 = vector.broadcast %cst_27 : f32 to vector<8x128xf32>
    %181 = arith.addf %179, %180 : vector<8x128xf32>
    %182 = arith.mulf %181, %109 : vector<8x128xf32>
    %183 = math.sqrt %182 : vector<8x128xf32>
    %cst_28 = arith.constant 0.000000e+00 : f32
    %184 = vector.broadcast %cst_28 : f32 to vector<8x128xf32>
    %185 = arith.subf %184, %168 : vector<8x128xf32>
    %cst_29 = arith.constant 0.000000e+00 : f32
    %186 = vector.broadcast %cst_29 : f32 to vector<8x128xf32>
    %187 = arith.maximumf %185, %186 : vector<8x128xf32>
    %cst_30 = arith.constant 1.000000e+00 : f32
    %188 = vector.broadcast %cst_30 : f32 to vector<8x128xf32>
    %189 = arith.subf %188, %183 : vector<8x128xf32>
    %cst_31 = arith.constant 0.000000e+00 : f32
    %190 = vector.broadcast %cst_31 : f32 to vector<8x128xf32>
    %191 = arith.maximumf %189, %190 : vector<8x128xf32>
    %192 = arith.mulf %187, %191 : vector<8x128xf32>
    %193 = arith.mulf %192, %192 : vector<8x128xf32>
    %194 = arith.addf %151, %193 : vector<8x128xf32>
    %c15 = arith.constant 15 : index
    %195 = arith.index_cast %6 : i32 to index
    %c0_32 = arith.constant 0 : index
    %196 = vector.load %arg2[%c15, %195, %c0_32] : memref<19x8x128xf32, #tpu.memory_space<vmem>>, vector<1x8x128xf32>
    %197 = vector.shape_cast %196 : vector<1x8x128xf32> to vector<8x128xf32>
    %c16 = arith.constant 16 : index
    %198 = arith.index_cast %6 : i32 to index
    %c0_33 = arith.constant 0 : index
    %199 = vector.load %arg2[%c16, %198, %c0_33] : memref<19x8x128xf32, #tpu.memory_space<vmem>>, vector<1x8x128xf32>
    %200 = vector.shape_cast %199 : vector<1x8x128xf32> to vector<8x128xf32>
    %c17 = arith.constant 17 : index
    %201 = arith.index_cast %6 : i32 to index
    %c0_34 = arith.constant 0 : index
    %202 = vector.load %arg2[%c17, %201, %c0_34] : memref<19x8x128xf32, #tpu.memory_space<vmem>>, vector<1x8x128xf32>
    %203 = vector.shape_cast %202 : vector<1x8x128xf32> to vector<8x128xf32>
    %204 = arith.subf %197, %41 : vector<8x128xf32>
    %205 = arith.subf %200, %43 : vector<8x128xf32>
    %206 = arith.subf %203, %45 : vector<8x128xf32>
    %207 = arith.mulf %204, %69 : vector<8x128xf32>
    %208 = arith.mulf %205, %70 : vector<8x128xf32>
    %209 = arith.addf %207, %208 : vector<8x128xf32>
    %210 = arith.mulf %206, %71 : vector<8x128xf32>
    %211 = arith.addf %209, %210 : vector<8x128xf32>
    %212 = arith.mulf %69, %211 : vector<8x128xf32>
    %213 = arith.mulf %70, %211 : vector<8x128xf32>
    %214 = arith.mulf %71, %211 : vector<8x128xf32>
    %215 = arith.subf %204, %212 : vector<8x128xf32>
    %216 = arith.subf %205, %213 : vector<8x128xf32>
    %217 = arith.subf %206, %214 : vector<8x128xf32>
    %218 = arith.mulf %215, %215 : vector<8x128xf32>
    %219 = arith.mulf %216, %216 : vector<8x128xf32>
    %220 = arith.addf %218, %219 : vector<8x128xf32>
    %221 = arith.mulf %217, %217 : vector<8x128xf32>
    %222 = arith.addf %220, %221 : vector<8x128xf32>
    %cst_35 = arith.constant 9.99999996E-13 : f32
    %223 = vector.broadcast %cst_35 : f32 to vector<8x128xf32>
    %224 = arith.addf %222, %223 : vector<8x128xf32>
    %225 = arith.mulf %224, %109 : vector<8x128xf32>
    %226 = math.sqrt %225 : vector<8x128xf32>
    %cst_36 = arith.constant 0.000000e+00 : f32
    %227 = vector.broadcast %cst_36 : f32 to vector<8x128xf32>
    %228 = arith.subf %227, %211 : vector<8x128xf32>
    %cst_37 = arith.constant 0.000000e+00 : f32
    %229 = vector.broadcast %cst_37 : f32 to vector<8x128xf32>
    %230 = arith.maximumf %228, %229 : vector<8x128xf32>
    %cst_38 = arith.constant 1.000000e+00 : f32
    %231 = vector.broadcast %cst_38 : f32 to vector<8x128xf32>
    %232 = arith.subf %231, %226 : vector<8x128xf32>
    %cst_39 = arith.constant 0.000000e+00 : f32
    %233 = vector.broadcast %cst_39 : f32 to vector<8x128xf32>
    %234 = arith.maximumf %232, %233 : vector<8x128xf32>
    %235 = arith.mulf %230, %234 : vector<8x128xf32>
    %236 = arith.mulf %235, %235 : vector<8x128xf32>
    %237 = arith.addf %194, %236 : vector<8x128xf32>
    %cst_40 = arith.constant 1.000000e+06 : f32
    %238 = vector.broadcast %cst_40 : f32 to vector<8x128xf32>
    %239 = arith.mulf %237, %238 : vector<8x128xf32>
    %c9_41 = arith.constant 9 : index
    %240 = arith.index_cast %6 : i32 to index
    %c0_42 = arith.constant 0 : index
    %241 = vector.load %arg2[%c9_41, %240, %c0_42] : memref<19x8x128xf32, #tpu.memory_space<vmem>>, vector<1x8x128xf32>
    %242 = vector.shape_cast %241 : vector<1x8x128xf32> to vector<8x128xf32>
    %c10_43 = arith.constant 10 : index
    %243 = arith.index_cast %6 : i32 to index
    %c0_44 = arith.constant 0 : index
    %244 = vector.load %arg2[%c10_43, %243, %c0_44] : memref<19x8x128xf32, #tpu.memory_space<vmem>>, vector<1x8x128xf32>
    %245 = vector.shape_cast %244 : vector<1x8x128xf32> to vector<8x128xf32>
    %c11_45 = arith.constant 11 : index
    %246 = arith.index_cast %6 : i32 to index
    %c0_46 = arith.constant 0 : index
    %247 = vector.load %arg2[%c11_45, %246, %c0_46] : memref<19x8x128xf32, #tpu.memory_space<vmem>>, vector<1x8x128xf32>
    %248 = vector.shape_cast %247 : vector<1x8x128xf32> to vector<8x128xf32>
    %c12_47 = arith.constant 12 : index
    %249 = arith.index_cast %6 : i32 to index
    %c0_48 = arith.constant 0 : index
    %250 = vector.load %arg2[%c12_47, %249, %c0_48] : memref<19x8x128xf32, #tpu.memory_space<vmem>>, vector<1x8x128xf32>
    %251 = vector.shape_cast %250 : vector<1x8x128xf32> to vector<8x128xf32>
    %c13_49 = arith.constant 13 : index
    %252 = arith.index_cast %6 : i32 to index
    %c0_50 = arith.constant 0 : index
    %253 = vector.load %arg2[%c13_49, %252, %c0_50] : memref<19x8x128xf32, #tpu.memory_space<vmem>>, vector<1x8x128xf32>
    %254 = vector.shape_cast %253 : vector<1x8x128xf32> to vector<8x128xf32>
    %c14_51 = arith.constant 14 : index
    %255 = arith.index_cast %6 : i32 to index
    %c0_52 = arith.constant 0 : index
    %256 = vector.load %arg2[%c14_51, %255, %c0_52] : memref<19x8x128xf32, #tpu.memory_space<vmem>>, vector<1x8x128xf32>
    %257 = vector.shape_cast %256 : vector<1x8x128xf32> to vector<8x128xf32>
    %c15_53 = arith.constant 15 : index
    %258 = arith.index_cast %6 : i32 to index
    %c0_54 = arith.constant 0 : index
    %259 = vector.load %arg2[%c15_53, %258, %c0_54] : memref<19x8x128xf32, #tpu.memory_space<vmem>>, vector<1x8x128xf32>
    %260 = vector.shape_cast %259 : vector<1x8x128xf32> to vector<8x128xf32>
    %c16_55 = arith.constant 16 : index
    %261 = arith.index_cast %6 : i32 to index
    %c0_56 = arith.constant 0 : index
    %262 = vector.load %arg2[%c16_55, %261, %c0_56] : memref<19x8x128xf32, #tpu.memory_space<vmem>>, vector<1x8x128xf32>
    %263 = vector.shape_cast %262 : vector<1x8x128xf32> to vector<8x128xf32>
    %c17_57 = arith.constant 17 : index
    %264 = arith.index_cast %6 : i32 to index
    %c0_58 = arith.constant 0 : index
    %265 = vector.load %arg2[%c17_57, %264, %c0_58] : memref<19x8x128xf32, #tpu.memory_space<vmem>>, vector<1x8x128xf32>
    %266 = vector.shape_cast %265 : vector<1x8x128xf32> to vector<8x128xf32>
    %267 = arith.addf %242, %251 : vector<8x128xf32>
    %268 = arith.addf %245, %254 : vector<8x128xf32>
    %269 = arith.addf %248, %257 : vector<8x128xf32>
    %270 = arith.addf %267, %260 : vector<8x128xf32>
    %271 = arith.addf %268, %263 : vector<8x128xf32>
    %272 = arith.addf %269, %266 : vector<8x128xf32>
    %cst_59 = arith.constant 0.333333343 : f32
    %273 = vector.broadcast %cst_59 : f32 to vector<8x128xf32>
    %274 = arith.mulf %270, %273 : vector<8x128xf32>
    %cst_60 = arith.constant 0.333333343 : f32
    %275 = vector.broadcast %cst_60 : f32 to vector<8x128xf32>
    %276 = arith.mulf %271, %275 : vector<8x128xf32>
    %cst_61 = arith.constant 0.333333343 : f32
    %277 = vector.broadcast %cst_61 : f32 to vector<8x128xf32>
    %278 = arith.mulf %272, %277 : vector<8x128xf32>
    %279 = arith.subf %251, %242 : vector<8x128xf32>
    %280 = arith.subf %254, %245 : vector<8x128xf32>
    %281 = arith.subf %257, %248 : vector<8x128xf32>
    %282 = arith.subf %260, %242 : vector<8x128xf32>
    %283 = arith.subf %263, %245 : vector<8x128xf32>
    %284 = arith.subf %266, %248 : vector<8x128xf32>
    %285 = arith.mulf %280, %284 : vector<8x128xf32>
    %286 = arith.mulf %281, %283 : vector<8x128xf32>
    %287 = arith.subf %285, %286 : vector<8x128xf32>
    %288 = arith.mulf %281, %282 : vector<8x128xf32>
    %289 = arith.mulf %279, %284 : vector<8x128xf32>
    %290 = arith.subf %288, %289 : vector<8x128xf32>
    %291 = arith.mulf %279, %283 : vector<8x128xf32>
    %292 = arith.mulf %280, %282 : vector<8x128xf32>
    %293 = arith.subf %291, %292 : vector<8x128xf32>
    %294 = arith.mulf %287, %287 : vector<8x128xf32>
    %295 = arith.mulf %290, %290 : vector<8x128xf32>
    %296 = arith.addf %294, %295 : vector<8x128xf32>
    %297 = arith.mulf %293, %293 : vector<8x128xf32>
    %298 = arith.addf %296, %297 : vector<8x128xf32>
    %cst_62 = arith.constant 9.99999996E-13 : f32
    %299 = vector.broadcast %cst_62 : f32 to vector<8x128xf32>
    %300 = arith.addf %298, %299 : vector<8x128xf32>
    %301 = math.rsqrt %300 : vector<8x128xf32>
    %302 = arith.mulf %287, %301 : vector<8x128xf32>
    %303 = arith.mulf %290, %301 : vector<8x128xf32>
    %304 = arith.mulf %293, %301 : vector<8x128xf32>
    %305 = arith.subf %242, %274 : vector<8x128xf32>
    %306 = arith.subf %245, %276 : vector<8x128xf32>
    %307 = arith.subf %248, %278 : vector<8x128xf32>
    %308 = arith.subf %242, %274 : vector<8x128xf32>
    %309 = arith.subf %245, %276 : vector<8x128xf32>
    %310 = arith.subf %248, %278 : vector<8x128xf32>
    %311 = arith.mulf %305, %308 : vector<8x128xf32>
    %312 = arith.mulf %306, %309 : vector<8x128xf32>
    %313 = arith.addf %311, %312 : vector<8x128xf32>
    %314 = arith.mulf %307, %310 : vector<8x128xf32>
    %315 = arith.addf %313, %314 : vector<8x128xf32>
    %316 = arith.subf %251, %274 : vector<8x128xf32>
    %317 = arith.subf %254, %276 : vector<8x128xf32>
    %318 = arith.subf %257, %278 : vector<8x128xf32>
    %319 = arith.subf %251, %274 : vector<8x128xf32>
    %320 = arith.subf %254, %276 : vector<8x128xf32>
    %321 = arith.subf %257, %278 : vector<8x128xf32>
    %322 = arith.mulf %316, %319 : vector<8x128xf32>
    %323 = arith.mulf %317, %320 : vector<8x128xf32>
    %324 = arith.addf %322, %323 : vector<8x128xf32>
    %325 = arith.mulf %318, %321 : vector<8x128xf32>
    %326 = arith.addf %324, %325 : vector<8x128xf32>
    %327 = arith.subf %260, %274 : vector<8x128xf32>
    %328 = arith.subf %263, %276 : vector<8x128xf32>
    %329 = arith.subf %266, %278 : vector<8x128xf32>
    %330 = arith.subf %260, %274 : vector<8x128xf32>
    %331 = arith.subf %263, %276 : vector<8x128xf32>
    %332 = arith.subf %266, %278 : vector<8x128xf32>
    %333 = arith.mulf %327, %330 : vector<8x128xf32>
    %334 = arith.mulf %328, %331 : vector<8x128xf32>
    %335 = arith.addf %333, %334 : vector<8x128xf32>
    %336 = arith.mulf %329, %332 : vector<8x128xf32>
    %337 = arith.addf %335, %336 : vector<8x128xf32>
    %338 = arith.maximumf %315, %326 : vector<8x128xf32>
    %339 = arith.maximumf %338, %337 : vector<8x128xf32>
    %cst_63 = arith.constant 9.99999996E-13 : f32
    %340 = vector.broadcast %cst_63 : f32 to vector<8x128xf32>
    %341 = arith.addf %339, %340 : vector<8x128xf32>
    %342 = tpu.reciprocal %341 {approx = true} : vector<8x128xf32> -> vector<8x128xf32>
    %c0_64 = arith.constant 0 : index
    %343 = arith.index_cast %6 : i32 to index
    %c0_65 = arith.constant 0 : index
    %344 = vector.load %arg2[%c0_64, %343, %c0_65] : memref<19x8x128xf32, #tpu.memory_space<vmem>>, vector<1x8x128xf32>
    %345 = vector.shape_cast %344 : vector<1x8x128xf32> to vector<8x128xf32>
    %c1_66 = arith.constant 1 : index
    %346 = arith.index_cast %6 : i32 to index
    %c0_67 = arith.constant 0 : index
    %347 = vector.load %arg2[%c1_66, %346, %c0_67] : memref<19x8x128xf32, #tpu.memory_space<vmem>>, vector<1x8x128xf32>
    %348 = vector.shape_cast %347 : vector<1x8x128xf32> to vector<8x128xf32>
    %c2_68 = arith.constant 2 : index
    %349 = arith.index_cast %6 : i32 to index
    %c0_69 = arith.constant 0 : index
    %350 = vector.load %arg2[%c2_68, %349, %c0_69] : memref<19x8x128xf32, #tpu.memory_space<vmem>>, vector<1x8x128xf32>
    %351 = vector.shape_cast %350 : vector<1x8x128xf32> to vector<8x128xf32>
    %352 = arith.subf %345, %274 : vector<8x128xf32>
    %353 = arith.subf %348, %276 : vector<8x128xf32>
    %354 = arith.subf %351, %278 : vector<8x128xf32>
    %355 = arith.mulf %352, %302 : vector<8x128xf32>
    %356 = arith.mulf %353, %303 : vector<8x128xf32>
    %357 = arith.addf %355, %356 : vector<8x128xf32>
    %358 = arith.mulf %354, %304 : vector<8x128xf32>
    %359 = arith.addf %357, %358 : vector<8x128xf32>
    %360 = arith.mulf %302, %359 : vector<8x128xf32>
    %361 = arith.mulf %303, %359 : vector<8x128xf32>
    %362 = arith.mulf %304, %359 : vector<8x128xf32>
    %363 = arith.subf %352, %360 : vector<8x128xf32>
    %364 = arith.subf %353, %361 : vector<8x128xf32>
    %365 = arith.subf %354, %362 : vector<8x128xf32>
    %366 = arith.mulf %363, %363 : vector<8x128xf32>
    %367 = arith.mulf %364, %364 : vector<8x128xf32>
    %368 = arith.addf %366, %367 : vector<8x128xf32>
    %369 = arith.mulf %365, %365 : vector<8x128xf32>
    %370 = arith.addf %368, %369 : vector<8x128xf32>
    %cst_70 = arith.constant 9.99999996E-13 : f32
    %371 = vector.broadcast %cst_70 : f32 to vector<8x128xf32>
    %372 = arith.addf %370, %371 : vector<8x128xf32>
    %373 = arith.mulf %372, %342 : vector<8x128xf32>
    %374 = math.sqrt %373 : vector<8x128xf32>
    %cst_71 = arith.constant 0.000000e+00 : f32
    %375 = vector.broadcast %cst_71 : f32 to vector<8x128xf32>
    %376 = arith.subf %375, %359 : vector<8x128xf32>
    %cst_72 = arith.constant 0.000000e+00 : f32
    %377 = vector.broadcast %cst_72 : f32 to vector<8x128xf32>
    %378 = arith.maximumf %376, %377 : vector<8x128xf32>
    %cst_73 = arith.constant 1.000000e+00 : f32
    %379 = vector.broadcast %cst_73 : f32 to vector<8x128xf32>
    %380 = arith.subf %379, %374 : vector<8x128xf32>
    %cst_74 = arith.constant 0.000000e+00 : f32
    %381 = vector.broadcast %cst_74 : f32 to vector<8x128xf32>
    %382 = arith.maximumf %380, %381 : vector<8x128xf32>
    %383 = arith.mulf %378, %382 : vector<8x128xf32>
    %384 = arith.mulf %383, %383 : vector<8x128xf32>
    %c3_75 = arith.constant 3 : index
    %385 = arith.index_cast %6 : i32 to index
    %c0_76 = arith.constant 0 : index
    %386 = vector.load %arg2[%c3_75, %385, %c0_76] : memref<19x8x128xf32, #tpu.memory_space<vmem>>, vector<1x8x128xf32>
    %387 = vector.shape_cast %386 : vector<1x8x128xf32> to vector<8x128xf32>
    %c4_77 = arith.constant 4 : index
    %388 = arith.index_cast %6 : i32 to index
    %c0_78 = arith.constant 0 : index
    %389 = vector.load %arg2[%c4_77, %388, %c0_78] : memref<19x8x128xf32, #tpu.memory_space<vmem>>, vector<1x8x128xf32>
    %390 = vector.shape_cast %389 : vector<1x8x128xf32> to vector<8x128xf32>
    %c5_79 = arith.constant 5 : index
    %391 = arith.index_cast %6 : i32 to index
    %c0_80 = arith.constant 0 : index
    %392 = vector.load %arg2[%c5_79, %391, %c0_80] : memref<19x8x128xf32, #tpu.memory_space<vmem>>, vector<1x8x128xf32>
    %393 = vector.shape_cast %392 : vector<1x8x128xf32> to vector<8x128xf32>
    %394 = arith.subf %387, %274 : vector<8x128xf32>
    %395 = arith.subf %390, %276 : vector<8x128xf32>
    %396 = arith.subf %393, %278 : vector<8x128xf32>
    %397 = arith.mulf %394, %302 : vector<8x128xf32>
    %398 = arith.mulf %395, %303 : vector<8x128xf32>
    %399 = arith.addf %397, %398 : vector<8x128xf32>
    %400 = arith.mulf %396, %304 : vector<8x128xf32>
    %401 = arith.addf %399, %400 : vector<8x128xf32>
    %402 = arith.mulf %302, %401 : vector<8x128xf32>
    %403 = arith.mulf %303, %401 : vector<8x128xf32>
    %404 = arith.mulf %304, %401 : vector<8x128xf32>
    %405 = arith.subf %394, %402 : vector<8x128xf32>
    %406 = arith.subf %395, %403 : vector<8x128xf32>
    %407 = arith.subf %396, %404 : vector<8x128xf32>
    %408 = arith.mulf %405, %405 : vector<8x128xf32>
    %409 = arith.mulf %406, %406 : vector<8x128xf32>
    %410 = arith.addf %408, %409 : vector<8x128xf32>
    %411 = arith.mulf %407, %407 : vector<8x128xf32>
    %412 = arith.addf %410, %411 : vector<8x128xf32>
    %cst_81 = arith.constant 9.99999996E-13 : f32
    %413 = vector.broadcast %cst_81 : f32 to vector<8x128xf32>
    %414 = arith.addf %412, %413 : vector<8x128xf32>
    %415 = arith.mulf %414, %342 : vector<8x128xf32>
    %416 = math.sqrt %415 : vector<8x128xf32>
    %cst_82 = arith.constant 0.000000e+00 : f32
    %417 = vector.broadcast %cst_82 : f32 to vector<8x128xf32>
    %418 = arith.subf %417, %401 : vector<8x128xf32>
    %cst_83 = arith.constant 0.000000e+00 : f32
    %419 = vector.broadcast %cst_83 : f32 to vector<8x128xf32>
    %420 = arith.maximumf %418, %419 : vector<8x128xf32>
    %cst_84 = arith.constant 1.000000e+00 : f32
    %421 = vector.broadcast %cst_84 : f32 to vector<8x128xf32>
    %422 = arith.subf %421, %416 : vector<8x128xf32>
    %cst_85 = arith.constant 0.000000e+00 : f32
    %423 = vector.broadcast %cst_85 : f32 to vector<8x128xf32>
    %424 = arith.maximumf %422, %423 : vector<8x128xf32>
    %425 = arith.mulf %420, %424 : vector<8x128xf32>
    %426 = arith.mulf %425, %425 : vector<8x128xf32>
    %427 = arith.addf %384, %426 : vector<8x128xf32>
    %c6_86 = arith.constant 6 : index
    %428 = arith.index_cast %6 : i32 to index
    %c0_87 = arith.constant 0 : index
    %429 = vector.load %arg2[%c6_86, %428, %c0_87] : memref<19x8x128xf32, #tpu.memory_space<vmem>>, vector<1x8x128xf32>
    %430 = vector.shape_cast %429 : vector<1x8x128xf32> to vector<8x128xf32>
    %c7_88 = arith.constant 7 : index
    %431 = arith.index_cast %6 : i32 to index
    %c0_89 = arith.constant 0 : index
    %432 = vector.load %arg2[%c7_88, %431, %c0_89] : memref<19x8x128xf32, #tpu.memory_space<vmem>>, vector<1x8x128xf32>
    %433 = vector.shape_cast %432 : vector<1x8x128xf32> to vector<8x128xf32>
    %c8_90 = arith.constant 8 : index
    %434 = arith.index_cast %6 : i32 to index
    %c0_91 = arith.constant 0 : index
    %435 = vector.load %arg2[%c8_90, %434, %c0_91] : memref<19x8x128xf32, #tpu.memory_space<vmem>>, vector<1x8x128xf32>
    %436 = vector.shape_cast %435 : vector<1x8x128xf32> to vector<8x128xf32>
    %437 = arith.subf %430, %274 : vector<8x128xf32>
    %438 = arith.subf %433, %276 : vector<8x128xf32>
    %439 = arith.subf %436, %278 : vector<8x128xf32>
    %440 = arith.mulf %437, %302 : vector<8x128xf32>
    %441 = arith.mulf %438, %303 : vector<8x128xf32>
    %442 = arith.addf %440, %441 : vector<8x128xf32>
    %443 = arith.mulf %439, %304 : vector<8x128xf32>
    %444 = arith.addf %442, %443 : vector<8x128xf32>
    %445 = arith.mulf %302, %444 : vector<8x128xf32>
    %446 = arith.mulf %303, %444 : vector<8x128xf32>
    %447 = arith.mulf %304, %444 : vector<8x128xf32>
    %448 = arith.subf %437, %445 : vector<8x128xf32>
    %449 = arith.subf %438, %446 : vector<8x128xf32>
    %450 = arith.subf %439, %447 : vector<8x128xf32>
    %451 = arith.mulf %448, %448 : vector<8x128xf32>
    %452 = arith.mulf %449, %449 : vector<8x128xf32>
    %453 = arith.addf %451, %452 : vector<8x128xf32>
    %454 = arith.mulf %450, %450 : vector<8x128xf32>
    %455 = arith.addf %453, %454 : vector<8x128xf32>
    %cst_92 = arith.constant 9.99999996E-13 : f32
    %456 = vector.broadcast %cst_92 : f32 to vector<8x128xf32>
    %457 = arith.addf %455, %456 : vector<8x128xf32>
    %458 = arith.mulf %457, %342 : vector<8x128xf32>
    %459 = math.sqrt %458 : vector<8x128xf32>
    %cst_93 = arith.constant 0.000000e+00 : f32
    %460 = vector.broadcast %cst_93 : f32 to vector<8x128xf32>
    %461 = arith.subf %460, %444 : vector<8x128xf32>
    %cst_94 = arith.constant 0.000000e+00 : f32
    %462 = vector.broadcast %cst_94 : f32 to vector<8x128xf32>
    %463 = arith.maximumf %461, %462 : vector<8x128xf32>
    %cst_95 = arith.constant 1.000000e+00 : f32
    %464 = vector.broadcast %cst_95 : f32 to vector<8x128xf32>
    %465 = arith.subf %464, %459 : vector<8x128xf32>
    %cst_96 = arith.constant 0.000000e+00 : f32
    %466 = vector.broadcast %cst_96 : f32 to vector<8x128xf32>
    %467 = arith.maximumf %465, %466 : vector<8x128xf32>
    %468 = arith.mulf %463, %467 : vector<8x128xf32>
    %469 = arith.mulf %468, %468 : vector<8x128xf32>
    %470 = arith.addf %427, %469 : vector<8x128xf32>
    %cst_97 = arith.constant 1.000000e+06 : f32
    %471 = vector.broadcast %cst_97 : f32 to vector<8x128xf32>
    %472 = arith.mulf %470, %471 : vector<8x128xf32>
    %473 = arith.addf %239, %472 : vector<8x128xf32>
    %c18 = arith.constant 18 : index
    %474 = arith.index_cast %6 : i32 to index
    %c0_98 = arith.constant 0 : index
    %475 = vector.load %arg2[%c18, %474, %c0_98] : memref<19x8x128xf32, #tpu.memory_space<vmem>>, vector<1x8x128xf32>
    %476 = vector.shape_cast %475 : vector<1x8x128xf32> to vector<8x128xf32>
    %c0_99 = arith.constant 0 : index
    %477 = arith.index_cast %6 : i32 to index
    %c0_100 = arith.constant 0 : index
    %478 = vector.load %arg3[%c0_99, %477, %c0_100] : memref<1x8x128xf32, #tpu.memory_space<vmem>>, vector<1x8x128xf32>
    %479 = vector.shape_cast %478 : vector<1x8x128xf32> to vector<8x128xf32>
    %480 = arith.mulf %473, %476 : vector<8x128xf32>
    %481 = arith.addf %479, %480 : vector<8x128xf32>
    %c0_101 = arith.constant 0 : index
    %482 = arith.index_cast %6 : i32 to index
    %c0_102 = arith.constant 0 : index
    %483 = vector.load %arg3[%c0_101, %482, %c0_102] : memref<1x8x128xf32, #tpu.memory_space<vmem>>, vector<1x8x128xf32>
    %484 = vector.shape_cast %483 : vector<1x8x128xf32> to vector<8x128xf32>
    %485 = vector.shape_cast %481 : vector<8x128xf32> to vector<1x8x128xf32>
    tpu.vector_store %arg3[%c0_101, %482, %c0_102], %485 {strides = array<i32>} : memref<1x8x128xf32, #tpu.memory_space<vmem>>, vector<1x8x128xf32>,
    %c1_i32_103 = arith.constant 1 : i32
    return
  }
  func.func @transform_0(%arg0: i32, %arg1: i32) -> (i32, i32, i32) {
    %c1_i32 = arith.constant 1 : i32
    %0 = arith.muli %arg0, %c1_i32 : i32
    %1 = arith.addi %0, %arg1 : i32
    %c0_i32 = arith.constant 0 : i32
    %c0_i32_0 = arith.constant 0 : i32
    %c0_i32_1 = arith.constant 0 : i32
    return %c0_i32, %1, %c0_i32_0 : i32, i32, i32
  }
  func.func @transform_1(%arg0: i32, %arg1: i32) -> (i32, i32, i32) {
    %c0_i32 = arith.constant 0 : i32
    %c0_i32_0 = arith.constant 0 : i32
    %c0_i32_1 = arith.constant 0 : i32
    return %arg0, %c0_i32, %c0_i32_0 : i32, i32, i32
  }
}

</mosaic_0001>

<llo_original>
// kernel: tpu_custom_call.1
$region0: #{tpu_custom_call.1}
  #allocation0 [shape = 'u32[]', space=smem, size = 0x4, offset = 0x4, fixed_abs, tag = 'smem constant byte address 0x4 - core index']
  #allocation1 [shape = 'u32[72,128]{1,0:T(1,128)}', space=vmem, size = 0x9000, scoped, tag = 'internal scratch']
  %s0 = inlined_call_operand.hbm [shape: f32[19,8,128], index: 0, kind: input, shape index: {}]
  %s1 = inlined_call_operand.hbm [shape: f32[1,8,128], index: 1, kind: output, shape index: {}]
  %s2 = sld [smem:[#allocation0]]
  $region22: #{tpu_custom_call.1} parent=0
    _
  %s4 = ssub.s32 1, %s2
  %s5 = scalar_select 0, %s4, %s2
  $region1: #{tpu_custom_call.1} parent=0
    #allocation2 [shape = 'u8[77824]{0}', space=vmem, size = 0x13000, scoped, tag = 'input window, operand 0, single buffered']
    #allocation3 [shape = 's32[1]{0}', space=sflag, size = 0x4, scoped, tag = 'scoped memory for tpu_custom_call.1']
    #allocation4 [shape = 's32[1]{0}', space=sflag, size = 0x4, scoped, tag = 'scoped memory for tpu_custom_call.1']
    #allocation5 [shape = 'u8[4096]{0}', space=vmem, size = 0x1000, scoped, tag = 'output window, operand 0, single buffered']
    %6 = vsyncpa [#allocation3], 0
    %7 = vsyncpa [#allocation4], 0
    // Predicated region
    $region2: #{tpu_custom_call.1} parent=1 // pred_check
      _
    $region3: #{tpu_custom_call.1} parent=1 // pred_check_branch
      %9 = sbr.rel (0) target = $region5
    $region4: #{tpu_custom_call.1} parent=1 // pred_region
      %s10 = sadd.s32 0, 0
      %12 = vsyncadd [#allocation3], 0
      %s13 = smul.addr %s10, 8
      %s14 = scalar_lea.hbm %s0, %s13
      %s15 = sshll.u32 %s14, 4
      %s16 = int_to_ptr.hbm [resolvable:$true] %s15
      %s17 = sshll.u32 [#allocation2], 4
      %s18 = int_to_ptr.vmem [resolvable:$true] %s17
      %23 = dma.hbm_to_vmem [thread:$0]  %s16, 2432, %s18, [#allocation3], 128, 128, 8
    $region5: #{tpu_custom_call.1} parent=1 // pred_fallthru
      _
    // Predicated region
    $region6: #{tpu_custom_call.1} parent=1 // pred_check
      _
    $region7: #{tpu_custom_call.1} parent=1 // pred_check_branch
      %25 = sbr.rel (0) target = $region9
    $region8: #{tpu_custom_call.1} parent=1 // pred_region
      %27 = dma.done [#allocation3], 2432
    $region9: #{tpu_custom_call.1} parent=1 // pred_fallthru
      _
    %s28 = sadd.s32 0, 0
    %p29 = scmp.eq.s32.totalorder 0, 0
    // Predicated region
    $region10: #{tpu_custom_call.1} parent=1 // pred_check
      %p30 = pneg %p29
    $region11: #{tpu_custom_call.1} parent=1 // pred_check_branch
      %32 = sbr.rel (%p30) target = $region13
    $region12: #{tpu_custom_call.1} parent=1 // pred_region
      %33 = vst [vmem:[#allocation5] sm:$0xff] 0.0
    $region13: #{tpu_custom_call.1} parent=1 // pred_fallthru
      _
    %v34 = vld [vmem:[#allocation2] sm:$0xff]
    %s35 = sadd.s32 0, 8
    %s36 = scalar_lea.vmem [#allocation2], %s35
    %v37 = vld [vmem:[%s36] sm:$0xff]
    %s38 = sadd.s32 0, 16
    %s39 = scalar_lea.vmem [#allocation2], %s38
    %v40 = vld [vmem:[%s39] sm:$0xff]
    %s41 = sadd.s32 0, 24
    %s42 = scalar_lea.vmem [#allocation2], %s41
    %v43 = vld [vmem:[%s42] sm:$0xff]
    %s44 = sadd.s32 0, 32
    %s45 = scalar_lea.vmem [#allocation2], %s44
    %v46 = vld [vmem:[%s45] sm:$0xff]
    %s47 = sadd.s32 0, 40
    %s48 = scalar_lea.vmem [#allocation2], %s47
    %v49 = vld [vmem:[%s48] sm:$0xff]
    %s50 = sadd.s32 0, 48
    %s51 = scalar_lea.vmem [#allocation2], %s50
    %v52 = vld [vmem:[%s51] sm:$0xff]
    %s53 = sadd.s32 0, 56
    %s54 = scalar_lea.vmem [#allocation2], %s53
    %v55 = vld [vmem:[%s54] sm:$0xff]
    %s56 = sadd.s32 0, 64
    %s57 = scalar_lea.vmem [#allocation2], %s56
    %v58 = vld [vmem:[%s57] sm:$0xff]
    %v59 = vadd.f32 %v34, %v43
    %v60 = vadd.f32 %v37, %v46
    %v61 = vadd.f32 %v40, %v49
    %v62 = vadd.f32 %v59, %v52
    %v63 = vadd.f32 %v60, %v55
    %v64 = vadd.f32 %v61, %v58
    %v65 = vmul.f32 %v62, 0.33333334
    %v66 = vmul.f32 %v63, 0.33333334
    %v67 = vmul.f32 %v64, 0.33333334
    %v68 = vsub.f32 %v43, %v34
    %v69 = vsub.f32 %v46, %v37
    %v70 = vsub.f32 %v49, %v40
    %v71 = vsub.f32 %v52, %v34
    %v72 = vsub.f32 %v55, %v37
    %v73 = vsub.f32 %v58, %v40
    %v74 = vmul.f32 %v69, %v73
    %v75 = vmul.f32 %v70, %v72
    %v76 = vsub.f32 %v74, %v75
    %v77 = vmul.f32 %v70, %v71
    %v78 = vmul.f32 %v68, %v73
    %v79 = vsub.f32 %v77, %v78
    %v80 = vmul.f32 %v68, %v72
    %v81 = vmul.f32 %v69, %v71
    %v82 = vsub.f32 %v80, %v81
    %v83 = vmul.f32 %v76, %v76
    %v84 = vmul.f32 %v79, %v79
    %v85 = vadd.f32 %v83, %v84
    %v86 = vmul.f32 %v82, %v82
    %v87 = vadd.f32 %v85, %v86
    %v88 = vadd.f32 %v87, 1e-12
    %v89 = vrsqrt.pop %v88
    %v90 = vmul.f32 %v89, %v88
    %v91 = vmul.f32 %v90, %v89
    %v92 = vmul.f32 0.5, %v91
    %v93 = vsub.f32 1.5, %v92
    %v94 = vmul.f32 %v89, %v93
    %vm95 = vweird.f32 %v88
    %vm96 = vweird.f32 %v89
    %vm97 = vmor %vm95, %vm96
    %v98 = vsel %vm97, %v89, %v94
    %v99 = vmul.f32 %v76, %v98
    %v100 = vmul.f32 %v79, %v98
    %v101 = vmul.f32 %v82, %v98
    %v102 = vsub.f32 %v34, %v65
    %v103 = vsub.f32 %v37, %v66
    %v104 = vsub.f32 %v40, %v67
    %v105 = vmul.f32 %v102, %v102
    %v106 = vmul.f32 %v103, %v103
    %v107 = vadd.f32 %v105, %v106
    %v108 = vmul.f32 %v104, %v104
    %v109 = vadd.f32 %v107, %v108
    %v110 = vsub.f32 %v43, %v65
    %v111 = vsub.f32 %v46, %v66
    %v112 = vsub.f32 %v49, %v67
    %v113 = vmul.f32 %v110, %v110
    %v114 = vmul.f32 %v111, %v111
    %v115 = vadd.f32 %v113, %v114
    %v116 = vmul.f32 %v112, %v112
    %v117 = vadd.f32 %v115, %v116
    %v118 = vsub.f32 %v52, %v65
    %v119 = vsub.f32 %v55, %v66
    %v120 = vsub.f32 %v58, %v67
    %v121 = vmul.f32 %v118, %v118
    %v122 = vmul.f32 %v119, %v119
    %v123 = vadd.f32 %v121, %v122
    %v124 = vmul.f32 %v120, %v120
    %v125 = vadd.f32 %v123, %v124
    %v126 = vmax.f32 %v109, %v117
    %v127 = vmax.f32 %v126, %v125
    %v128 = vadd.f32 %v127, 1e-12
    %v129 = vrcp.pop %v128
    %s130 = sadd.s32 0, 72
    %s131 = scalar_lea.vmem [#allocation2], %s130
    %v132 = vld [vmem:[%s131] sm:$0xff]
    %s133 = sadd.s32 0, 80
    %s134 = scalar_lea.vmem [#allocation2], %s133
    %v135 = vld [vmem:[%s134] sm:$0xff]
    %s136 = sadd.s32 0, 88
    %s137 = scalar_lea.vmem [#allocation2], %s136
    %v138 = vld [vmem:[%s137] sm:$0xff]
    %v139 = vsub.f32 %v132, %v65
    %v140 = vsub.f32 %v135, %v66
    %v141 = vsub.f32 %v138, %v67
    %v142 = vmul.f32 %v139, %v99
    %v143 = vmul.f32 %v140, %v100
    %v144 = vadd.f32 %v142, %v143
    %v145 = vmul.f32 %v141, %v101
    %v146 = vadd.f32 %v144, %v145
    %v147 = vmul.f32 %v99, %v146
    %v148 = vmul.f32 %v100, %v146
    %v149 = vmul.f32 %v101, %v146
    %v150 = vsub.f32 %v139, %v147
    %v151 = vsub.f32 %v140, %v148
    %v152 = vsub.f32 %v141, %v149
    %v153 = vmul.f32 %v150, %v150
    %v154 = vmul.f32 %v151, %v151
    %v155 = vadd.f32 %v153, %v154
    %v156 = vmul.f32 %v152, %v152
    %v157 = vadd.f32 %v155, %v156
    %v158 = vadd.f32 %v157, 1e-12
    %v159 = vmul.f32 %v158, %v129
    %v160 = vrsqrt.pop %v159
    %v161 = vmul.f32 %v160, %v159
    %v162 = vmul.f32 %v161, %v160
    %v163 = vmul.f32 0.5, %v162
    %v164 = vsub.f32 1.5, %v163
    %v165 = vmul.f32 %v160, %v164
    %v166 = vmul.f32 %v159, %v165
    %vm167 = vcmp.eq.f32.partialorder %v159, inf
    %v168 = vsel %vm167, %v159, %v166
    %vm169 = vcmp.eq.f32.partialorder %v159, 0.0
    %v170 = vand.u32 %v159, 2147483648
    %v171 = vsel %vm169, %v170, %v168
    %v172 = vsub.f32 0.0, %v146
    %v173 = vmax.f32 %v172, 0.0
    %v174 = vsub.f32 1.0, %v171
    %v175 = vmax.f32 %v174, 0.0
    %v176 = vmul.f32 %v173, %v175
    %v177 = vmul.f32 %v176, %v176
    %s178 = sadd.s32 0, 96
    %s179 = scalar_lea.vmem [#allocation2], %s178
    %v180 = vld [vmem:[%s179] sm:$0xff]
    %s181 = sadd.s32 0, 104
    %s182 = scalar_lea.vmem [#allocation2], %s181
    %v183 = vld [vmem:[%s182] sm:$0xff]
    %s184 = sadd.s32 0, 112
    %s185 = scalar_lea.vmem [#allocation2], %s184
    %v186 = vld [vmem:[%s185] sm:$0xff]
    %v187 = vsub.f32 %v180, %v65
    %v188 = vsub.f32 %v183, %v66
    %v189 = vsub.f32 %v186, %v67
    %v190 = vmul.f32 %v187, %v99
    %v191 = vmul.f32 %v188, %v100
    %v192 = vadd.f32 %v190, %v191
    %v193 = vmul.f32 %v189, %v101
    %v194 = vadd.f32 %v192, %v193
    %v195 = vmul.f32 %v99, %v194
    %v196 = vmul.f32 %v100, %v194
    %v197 = vmul.f32 %v101, %v194
    %v198 = vsub.f32 %v187, %v195
    %v199 = vsub.f32 %v188, %v196
    %v200 = vsub.f32 %v189, %v197
    %v201 = vmul.f32 %v198, %v198
    %v202 = vmul.f32 %v199, %v199
    %v203 = vadd.f32 %v201, %v202
    %v204 = vmul.f32 %v200, %v200
    %v205 = vadd.f32 %v203, %v204
    %v206 = vadd.f32 %v205, 1e-12
    %v207 = vmul.f32 %v206, %v129
    %v208 = vrsqrt.pop %v207
    %v209 = vmul.f32 %v208, %v207
    %v210 = vmul.f32 %v209, %v208
    %v211 = vmul.f32 0.5, %v210
    %v212 = vsub.f32 1.5, %v211
    %v213 = vmul.f32 %v208, %v212
    %v214 = vmul.f32 %v207, %v213
    %vm215 = vcmp.eq.f32.partialorder %v207, inf
    %v216 = vsel %vm215, %v207, %v214
    %vm217 = vcmp.eq.f32.partialorder %v207, 0.0
    %v218 = vand.u32 %v207, 2147483648
    %v219 = vsel %vm217, %v218, %v216
    %v220 = vsub.f32 0.0, %v194
    %v221 = vmax.f32 %v220, 0.0
    %v222 = vsub.f32 1.0, %v219
    %v223 = vmax.f32 %v222, 0.0
    %v224 = vmul.f32 %v221, %v223
    %v225 = vmul.f32 %v224, %v224
    %v226 = vadd.f32 %v177, %v225
    %s227 = sadd.s32 0, 120
    %s228 = scalar_lea.vmem [#allocation2], %s227
    %v229 = vld [vmem:[%s228] sm:$0xff]
    %s230 = sadd.s32 0, 128
    %s231 = scalar_lea.vmem [#allocation2], %s230
    %v232 = vld [vmem:[%s231] sm:$0xff]
    %s233 = sadd.s32 0, 136
    %s234 = scalar_lea.vmem [#allocation2], %s233
    %v235 = vld [vmem:[%s234] sm:$0xff]
    %v236 = vsub.f32 %v229, %v65
    %v237 = vsub.f32 %v232, %v66
    %v238 = vsub.f32 %v235, %v67
    %v239 = vmul.f32 %v236, %v99
    %v240 = vmul.f32 %v237, %v100
    %v241 = vadd.f32 %v239, %v240
    %v242 = vmul.f32 %v238, %v101
    %v243 = vadd.f32 %v241, %v242
    %v244 = vmul.f32 %v99, %v243
    %v245 = vmul.f32 %v100, %v243
    %v246 = vmul.f32 %v101, %v243
    %v247 = vsub.f32 %v236, %v244
    %v248 = vsub.f32 %v237, %v245
    %v249 = vsub.f32 %v238, %v246
    %v250 = vmul.f32 %v247, %v247
    %v251 = vmul.f32 %v248, %v248
    %v252 = vadd.f32 %v250, %v251
    %v253 = vmul.f32 %v249, %v249
    %v254 = vadd.f32 %v252, %v253
    %v255 = vadd.f32 %v254, 1e-12
    %v256 = vmul.f32 %v255, %v129
    %v257 = vrsqrt.pop %v256
    %v258 = vmul.f32 %v257, %v256
    %v259 = vmul.f32 %v258, %v257
    %v260 = vmul.f32 0.5, %v259
    %v261 = vsub.f32 1.5, %v260
    %v262 = vmul.f32 %v257, %v261
    %v263 = vmul.f32 %v256, %v262
    %vm264 = vcmp.eq.f32.partialorder %v256, inf
    %v265 = vsel %vm264, %v256, %v263
    %vm266 = vcmp.eq.f32.partialorder %v256, 0.0
    %v267 = vand.u32 %v256, 2147483648
    %v268 = vsel %vm266, %v267, %v265
    %v269 = vsub.f32 0.0, %v243
    %v270 = vmax.f32 %v269, 0.0
    %v271 = vsub.f32 1.0, %v268
    %v272 = vmax.f32 %v271, 0.0
    %v273 = vmul.f32 %v270, %v272
    %v274 = vmul.f32 %v273, %v273
    %v275 = vadd.f32 %v226, %v274
    %v276 = vmul.f32 %v275, 1000000.0
    %v277 = vadd.f32 %v132, %v180
    %v278 = vadd.f32 %v135, %v183
    %v279 = vadd.f32 %v138, %v186
    %v280 = vadd.f32 %v277, %v229
    %v281 = vadd.f32 %v278, %v232
    %v282 = vadd.f32 %v279, %v235
    %v283 = vmul.f32 %v280, 0.33333334
    %v284 = vmul.f32 %v281, 0.33333334
    %v285 = vmul.f32 %v282, 0.33333334
    %v286 = vsub.f32 %v180, %v132
    %v287 = vsub.f32 %v183, %v135
    %v288 = vsub.f32 %v186, %v138
    %v289 = vsub.f32 %v229, %v132
    %v290 = vsub.f32 %v232, %v135
    %v291 = vsub.f32 %v235, %v138
    %v292 = vmul.f32 %v287, %v291
    %v293 = vmul.f32 %v288, %v290
    %v294 = vsub.f32 %v292, %v293
    %v295 = vmul.f32 %v288, %v289
    %v296 = vmul.f32 %v286, %v291
    %v297 = vsub.f32 %v295, %v296
    %v298 = vmul.f32 %v286, %v290
    %v299 = vmul.f32 %v287, %v289
    %v300 = vsub.f32 %v298, %v299
    %v301 = vmul.f32 %v294, %v294
    %v302 = vmul.f32 %v297, %v297
    %v303 = vadd.f32 %v301, %v302
    %v304 = vmul.f32 %v300, %v300
    %v305 = vadd.f32 %v303, %v304
    %v306 = vadd.f32 %v305, 1e-12
    %v307 = vrsqrt.pop %v306
    %v308 = vmul.f32 %v307, %v306
    %v309 = vmul.f32 %v308, %v307
    %v310 = vmul.f32 0.5, %v309
    %v311 = vsub.f32 1.5, %v310
    %v312 = vmul.f32 %v307, %v311
    %vm313 = vweird.f32 %v306
    %vm314 = vweird.f32 %v307
    %vm315 = vmor %vm313, %vm314
    %v316 = vsel %vm315, %v307, %v312
    %v317 = vmul.f32 %v294, %v316
    %v318 = vmul.f32 %v297, %v316
    %v319 = vmul.f32 %v300, %v316
    %v320 = vsub.f32 %v132, %v283
    %v321 = vsub.f32 %v135, %v284
    %v322 = vsub.f32 %v138, %v285
    %v323 = vmul.f32 %v320, %v320
    %v324 = vmul.f32 %v321, %v321
    %v325 = vadd.f32 %v323, %v324
    %v326 = vmul.f32 %v322, %v322
    %v327 = vadd.f32 %v325, %v326
    %v328 = vsub.f32 %v180, %v283
    %v329 = vsub.f32 %v183, %v284
    %v330 = vsub.f32 %v186, %v285
    %v331 = vmul.f32 %v328, %v328
    %v332 = vmul.f32 %v329, %v329
    %v333 = vadd.f32 %v331, %v332
    %v334 = vmul.f32 %v330, %v330
    %v335 = vadd.f32 %v333, %v334
    %v336 = vsub.f32 %v229, %v283
    %v337 = vsub.f32 %v232, %v284
    %v338 = vsub.f32 %v235, %v285
    %v339 = vmul.f32 %v336, %v336
    %v340 = vmul.f32 %v337, %v337
    %v341 = vadd.f32 %v339, %v340
    %v342 = vmul.f32 %v338, %v338
    %v343 = vadd.f32 %v341, %v342
    %v344 = vmax.f32 %v327, %v335
    %v345 = vmax.f32 %v344, %v343
    %v346 = vadd.f32 %v345, 1e-12
    %v347 = vrcp.pop %v346
    %v348 = vsub.f32 %v34, %v283
    %v349 = vsub.f32 %v37, %v284
    %v350 = vsub.f32 %v40, %v285
    %v351 = vmul.f32 %v348, %v317
    %v352 = vmul.f32 %v349, %v318
    %v353 = vadd.f32 %v351, %v352
    %v354 = vmul.f32 %v350, %v319
    %v355 = vadd.f32 %v353, %v354
    %v356 = vmul.f32 %v317, %v355
    %v357 = vmul.f32 %v318, %v355
    %v358 = vmul.f32 %v319, %v355
    %v359 = vsub.f32 %v348, %v356
    %v360 = vsub.f32 %v349, %v357
    %v361 = vsub.f32 %v350, %v358
    %v362 = vmul.f32 %v359, %v359
    %v363 = vmul.f32 %v360, %v360
    %v364 = vadd.f32 %v362, %v363
    %v365 = vmul.f32 %v361, %v361
    %v366 = vadd.f32 %v364, %v365
    %v367 = vadd.f32 %v366, 1e-12
    %v368 = vmul.f32 %v367, %v347
    %v369 = vrsqrt.pop %v368
    %v370 = vmul.f32 %v369, %v368
    %v371 = vmul.f32 %v370, %v369
    %v372 = vmul.f32 0.5, %v371
    %v373 = vsub.f32 1.5, %v372
    %v374 = vmul.f32 %v369, %v373
    %v375 = vmul.f32 %v368, %v374
    %vm376 = vcmp.eq.f32.partialorder %v368, inf
    %v377 = vsel %vm376, %v368, %v375
    %vm378 = vcmp.eq.f32.partialorder %v368, 0.0
    %v379 = vand.u32 %v368, 2147483648
    %v380 = vsel %vm378, %v379, %v377
    %v381 = vsub.f32 0.0, %v355
    %v382 = vmax.f32 %v381, 0.0
    %v383 = vsub.f32 1.0, %v380
    %v384 = vmax.f32 %v383, 0.0
    %v385 = vmul.f32 %v382, %v384
    %v386 = vmul.f32 %v385, %v385
    %v387 = vsub.f32 %v43, %v283
    %v388 = vsub.f32 %v46, %v284
    %v389 = vsub.f32 %v49, %v285
    %v390 = vmul.f32 %v387, %v317
    %v391 = vmul.f32 %v388, %v318
    %v392 = vadd.f32 %v390, %v391
    %v393 = vmul.f32 %v389, %v319
    %v394 = vadd.f32 %v392, %v393
    %v395 = vmul.f32 %v317, %v394
    %v396 = vmul.f32 %v318, %v394
    %v397 = vmul.f32 %v319, %v394
    %v398 = vsub.f32 %v387, %v395
    %v399 = vsub.f32 %v388, %v396
    %v400 = vsub.f32 %v389, %v397
    %v401 = vmul.f32 %v398, %v398
    %v402 = vmul.f32 %v399, %v399
    %v403 = vadd.f32 %v401, %v402
    %v404 = vmul.f32 %v400, %v400
    %v405 = vadd.f32 %v403, %v404
    %v406 = vadd.f32 %v405, 1e-12
    %v407 = vmul.f32 %v406, %v347
    %v408 = vrsqrt.pop %v407
    %v409 = vmul.f32 %v408, %v407
    %v410 = vmul.f32 %v409, %v408
    %v411 = vmul.f32 0.5, %v410
    %v412 = vsub.f32 1.5, %v411
    %v413 = vmul.f32 %v408, %v412
    %v414 = vmul.f32 %v407, %v413
    %vm415 = vcmp.eq.f32.partialorder %v407, inf
    %v416 = vsel %vm415, %v407, %v414
    %vm417 = vcmp.eq.f32.partialorder %v407, 0.0
    %v418 = vand.u32 %v407, 2147483648
    %v419 = vsel %vm417, %v418, %v416
    %v420 = vsub.f32 0.0, %v394
    %v421 = vmax.f32 %v420, 0.0
    %v422 = vsub.f32 1.0, %v419
    %v423 = vmax.f32 %v422, 0.0
    %v424 = vmul.f32 %v421, %v423
    %v425 = vmul.f32 %v424, %v424
    %v426 = vadd.f32 %v386, %v425
    %v427 = vsub.f32 %v52, %v283
    %v428 = vsub.f32 %v55, %v284
    %v429 = vsub.f32 %v58, %v285
    %v430 = vmul.f32 %v427, %v317
    %v431 = vmul.f32 %v428, %v318
    %v432 = vadd.f32 %v430, %v431
    %v433 = vmul.f32 %v429, %v319
    %v434 = vadd.f32 %v432, %v433
    %v435 = vmul.f32 %v317, %v434
    %v436 = vmul.f32 %v318, %v434
    %v437 = vmul.f32 %v319, %v434
    %v438 = vsub.f32 %v427, %v435
    %v439 = vsub.f32 %v428, %v436
    %v440 = vsub.f32 %v429, %v437
    %v441 = vmul.f32 %v438, %v438
    %v442 = vmul.f32 %v439, %v439
    %v443 = vadd.f32 %v441, %v442
    %v444 = vmul.f32 %v440, %v440
    %v445 = vadd.f32 %v443, %v444
    %v446 = vadd.f32 %v445, 1e-12
    %v447 = vmul.f32 %v446, %v347
    %v448 = vrsqrt.pop %v447
    %v449 = vmul.f32 %v448, %v447
    %v450 = vmul.f32 %v449, %v448
    %v451 = vmul.f32 0.5, %v450
    %v452 = vsub.f32 1.5, %v451
    %v453 = vmul.f32 %v448, %v452
    %v454 = vmul.f32 %v447, %v453
    %vm455 = vcmp.eq.f32.partialorder %v447, inf
    %v456 = vsel %vm455, %v447, %v454
    %vm457 = vcmp.eq.f32.partialorder %v447, 0.0
    %v458 = vand.u32 %v447, 2147483648
    %v459 = vsel %vm457, %v458, %v456
    %v460 = vsub.f32 0.0, %v434
    %v461 = vmax.f32 %v460, 0.0
    %v462 = vsub.f32 1.0, %v459
    %v463 = vmax.f32 %v462, 0.0
    %v464 = vmul.f32 %v461, %v463
    %v465 = vmul.f32 %v464, %v464
    %v466 = vadd.f32 %v426, %v465
    %v467 = vmul.f32 %v466, 1000000.0
    %v468 = vadd.f32 %v276, %v467
    %s469 = sadd.s32 0, 144
    %s470 = scalar_lea.vmem [#allocation2], %s469
    %v471 = vld [vmem:[%s470] sm:$0xff]
    %v472 = vld [vmem:[#allocation5] sm:$0xff]
    %v473 = vmul.f32 %v468, %v471
    %v474 = vadd.f32 %v472, %v473
    %475 = vst [vmem:[#allocation5] sm:$0xff] %v474
    // Predicated region
    $region14: #{tpu_custom_call.1} parent=1 // pred_check
      _
    $region15: #{tpu_custom_call.1} parent=1 // pred_check_branch
      %477 = sbr.rel (0) target = $region17
    $region16: #{tpu_custom_call.1} parent=1 // pred_region
      %479 = vsyncadd [#allocation4], 0
      %s481 = sshll.u32 [#allocation5], 4
      %s482 = int_to_ptr.vmem [resolvable:$true] %s481
      %s483 = sshll.u32 %s1, 4
      %s484 = int_to_ptr.hbm [resolvable:$true] %s483
      %486 = dma.vmem_to_hbm [thread:$0]  %s482, 128, %s484, [#allocation4]
    $region17: #{tpu_custom_call.1} parent=1 // pred_fallthru
      _
    // Predicated region
    $region18: #{tpu_custom_call.1} parent=1 // pred_check
      _
    $region19: #{tpu_custom_call.1} parent=1 // pred_check_branch
      %488 = sbr.rel (0) target = $region21
    $region20: #{tpu_custom_call.1} parent=1 // pred_region
      %490 = dma.done [#allocation4], 128
    $region21: #{tpu_custom_call.1} parent=1 // pred_fallthru
      _
    %491 = vsyncpa [#allocation3], 1
    %492 = vsyncpa [#allocation4], 1

</llo_original>
